<compile_context>
chip_gen: v6e
topology: v6e:2x2x1
jax: 0.10.0
libtpu: 0.0.40
codegen_flags: <defaults>
</compile_context>

<pallas_src>
import functools

import jax
import jax.numpy as jnp
from jax import lax
from jax.experimental import pallas as pl
from jax.experimental.pallas import tpu as pltpu


_TARGET_TILE_BYTES = 2 * 1024 * 1024  # ~2 MiB per input tile (review: 1-4 MiB)


def _round_up(x, m):
    return ((x + m - 1) // m) * m


def _vmem_budget_bytes():
    """Per-generation VMEM budget (leave ~1/4 headroom for Mosaic scratch)."""
    try:
        cap = int(pltpu.get_tpu_info().vmem_capacity_bytes)
    except Exception:
        cap = 64 * 1024 * 1024  # conservative: v7x per-TensorCore VMEM
    return min((cap * 3) // 4, 96 * 1024 * 1024)


def _choose_block_rows(M, D, in_elem_bytes, vmem_budget):
    """Row-tile size: ~2 MiB per input tile, clamped to the VMEM budget."""
    d_lanes = _round_up(max(D, 1), 128)  # physical lane width of one row
    # Budget per tile row: 3 inputs x 2 pipeline buffers at input precision,
    # plus ~4 tile-sized f32 temporaries (casts / diff / products) that Mosaic
    # may materialize in internal scratch.
    per_row_bytes = d_lanes * (3 * 2 * in_elem_bytes + 4 * 4)
    tm_cap = max(8, ((vmem_budget // per_row_bytes) // 8) * 8)
    tm_target = max(8, ((_TARGET_TILE_BYTES // (d_lanes * in_elem_bytes)) // 8) * 8)
    tm = min(tm_target, tm_cap, _round_up(M, 8))
    return max(8, tm)


def _cost_loss_kernel(y_ref, gty_ref, cost_ref, row_ref, abs_ref, *,
                      m_total, block_rows, needs_mask):
    """One (TM, D) row tile.

    y_ref, gty_ref, cost_ref : (TM, D) VMEM, input dtype (cast to f32 here)
    row_ref                  : (TM, 1) VMEM, sum_j cost*(y - gt_y) per row
    abs_ref                  : (1, 1, 1) VMEM, this tile's sum |y - gt_y| partial
    """
    y = y_ref[...].astype(jnp.float32)
    g = gty_ref[...].astype(jnp.float32)
    c = cost_ref[...].astype(jnp.float32)

    diff = y - g                                                 # VPU elementwise
    row_ref[...] = jnp.sum(c * diff, axis=-1, keepdims=True)     # (TM, 1)

    absdiff = jnp.abs(diff)
    if needs_mask:
        # Tail tile: rows >= M in the VMEM buffer are garbage (inputs are not
        # padded). Select (not multiply) so garbage NaN/Inf cannot propagate.
        i = pl.program_id(0)
        row_ids = i * block_rows + lax.broadcasted_iota(
            jnp.int32, (block_rows, 1), 0)
        absdiff = jnp.where(row_ids < m_total, absdiff, 0.0)

    # Per-tile partial sum of |diff| -> independent (1,1,1) output block, so the
    # grid axis has no carried state and can be marked "parallel".
    abs_ref[...] = jnp.sum(absdiff, keepdims=True).reshape(1, 1, 1)


@functools.partial(jax.jit, static_argnames=("block_rows",))
def cost_loss(y, gt_y, cost, block_rows=None):
    """JAX/Pallas port of CostLoss.forward(y, gt_y, cost).

    Accepts f32 or bf16 inputs; accumulation is always f32 in-kernel.
    `block_rows` is an optional static override of the row tile (for testing).
    """
    orig_shape = y.shape
    D = int(orig_shape[-1])
    M = 1
    for s in orig_shape[:-1]:
        M *= int(s)
    numel = M * D

    y2 = y.reshape(M, D)
    g2 = gt_y.reshape(M, D)
    c2 = cost.reshape(M, D)

    in_bytes = max(jnp.dtype(y.dtype).itemsize,
                   jnp.dtype(gt_y.dtype).itemsize,
                   jnp.dtype(cost.dtype).itemsize)
    vmem_budget = _vmem_budget_bytes()
    if block_rows is None:
        tm = _choose_block_rows(M, D, in_bytes, vmem_budget)
    else:
        tm = _round_up(max(int(block_rows), 8), 8)

    num_tiles = pl.cdiv(M, tm)
    needs_mask = (M % tm) != 0

    kernel = functools.partial(_cost_loss_kernel, m_total=M, block_rows=tm,
                               needs_mask=needs_mask)

    row_sums, abs_parts = pl.pallas_call(
        kernel,
        out_shape=(jax.ShapeDtypeStruct((M, 1), jnp.float32),
                   jax.ShapeDtypeStruct((num_tiles, 1, 1), jnp.float32)),
        grid_spec=pltpu.PrefetchScalarGridSpec(
            num_scalar_prefetch=0,
            grid=(num_tiles,),
            in_specs=[pl.BlockSpec((tm, D), lambda i: (i, 0)),
                      pl.BlockSpec((tm, D), lambda i: (i, 0)),
                      pl.BlockSpec((tm, D), lambda i: (i, 0))],
            out_specs=[pl.BlockSpec((tm, 1), lambda i: (i, 0)),
                       pl.BlockSpec((1, 1, 1), lambda i: (i, 0, 0))],
        ),
        compiler_params=pltpu.CompilerParams(
            dimension_semantics=("parallel",),      # no carried state -> v7x 2-TC
            vmem_limit_bytes=int(vmem_budget),
        ),
    )(y2, g2, c2)

    # Tiny finalize under the same jit: both reductions used only valid data,
    # and the means divide by the ORIGINAL D / numel, so this is exactly the
    # unpadded math (summation order differs slightly from a one-shot mean).
    distance = jnp.sum(abs_parts) / jnp.float32(numel)           # L1Loss 'mean'
    row_mean = row_sums.reshape(orig_shape[:-1]) / jnp.float32(D)  # .mean(-1)
    loss = row_mean + distance
    return loss.astype(y.dtype)


def cost_loss_ref(y, gt_y, cost):
    """Pure-jnp reference mirroring the PyTorch module, for verification."""
    distance = jnp.mean(jnp.abs(y - gt_y))
    return (cost * (y - gt_y)).mean(-1) + distance


if __name__ == "__main__":
    key = jax.random.PRNGKey(0)
    k1, k2, k3 = jax.random.split(key, 3)

    # Small shapes consistent with the module: (batch, seq, hidden).
    B, N, D = 2, 16, 32
    y = jax.random.normal(k1, (B, N, D), dtype=jnp.float32)
    gt_y = jax.random.normal(k2, (B, N, D), dtype=jnp.float32)
    cost = jax.random.normal(k3, (B, N, D), dtype=jnp.float32)

    out = jax.block_until_ready(cost_loss(y, gt_y, cost))
    ref = cost_loss_ref(y, gt_y, cost)
    assert out.shape == (B, N), out.shape
    assert jnp.allclose(out, ref, rtol=1e-5, atol=1e-5), (out, ref)

    # Multi-tile + tail-masking path: M=150 rows, forced 16-row tiles, D=33.
    k4, k5, k6 = jax.random.split(jax.random.PRNGKey(1), 3)
    y2 = jax.random.normal(k4, (3, 50, 33), dtype=jnp.float32)
    g2 = jax.random.normal(k5, (3, 50, 33), dtype=jnp.float32)
    c2 = jax.random.normal(k6, (3, 50, 33), dtype=jnp.float32)
    out2 = jax.block_until_ready(cost_loss(y2, g2, c2, block_rows=16))
    ref2 = cost_loss_ref(y2, g2, c2)
    assert out2.shape == (3, 50), out2.shape
    assert jnp.allclose(out2, ref2, rtol=1e-5, atol=1e-5), (out2, ref2)

    # bf16 inputs are accepted directly (halved HBM reads; f32 accumulation).
    yb, gb, cb = (x.astype(jnp.bfloat16) for x in (y, gt_y, cost))
    out3 = jax.block_until_ready(cost_loss(yb, gb, cb))
    ref3 = cost_loss_ref(yb.astype(jnp.float32), gb.astype(jnp.float32),
                         cb.astype(jnp.float32))
    assert jnp.allclose(out3.astype(jnp.float32), ref3, rtol=2e-2, atol=2e-2)

    print("KERNEL_OK")
</pallas_src>

<mosaic_0001>
module attributes {stable_mosaic.version = 11 : i64} {
  func.func @_cost_loss_kernel(%arg0: i32, %arg1: memref<32x32xf32, #tpu.memory_space<vmem>>, %arg2: memref<32x32xf32, #tpu.memory_space<vmem>>, %arg3: memref<32x32xf32, #tpu.memory_space<vmem>>, %arg4: memref<32x1xf32, #tpu.memory_space<vmem>>, %arg5: memref<1x1x1xf32, #tpu.memory_space<vmem>>) attributes {dimension_semantics = [#tpu.dimension_semantics<parallel>], iteration_bounds = array<i64: 1>, scalar_prefetch = 0 : i64, scratch_operands = 0 : i64, tpu.core_type = #tpu.core_type<tc>, window_params = [{transform_indices = @transform_0, window_bounds = array<i64: 32, 32>}, {transform_indices = @transform_1, window_bounds = array<i64: 32, 32>}, {transform_indices = @transform_2, window_bounds = array<i64: 32, 32>}, {transform_indices = @transform_3, window_bounds = array<i64: 32, 1>}, {transform_indices = @transform_4, window_bounds = array<i64: 1, 1, 1>}]} {
    %c0 = arith.constant 0 : index
    %c0_0 = arith.constant 0 : index
    %0 = vector.load %arg1[%c0, %c0_0] : memref<32x32xf32, #tpu.memory_space<vmem>>, vector<32x32xf32>
    %c0_1 = arith.constant 0 : index
    %c0_2 = arith.constant 0 : index
    %1 = vector.load %arg2[%c0_1, %c0_2] : memref<32x32xf32, #tpu.memory_space<vmem>>, vector<32x32xf32>
    %c0_3 = arith.constant 0 : index
    %c0_4 = arith.constant 0 : index
    %2 = vector.load %arg3[%c0_3, %c0_4] : memref<32x32xf32, #tpu.memory_space<vmem>>, vector<32x32xf32>
    %3 = arith.subf %0, %1 : vector<32x32xf32>
    %4 = arith.mulf %2, %3 : vector<32x32xf32>
    %cst = arith.constant dense<0.000000e+00> : vector<32xf32>
    %5 = vector.multi_reduction <add>, %4, %cst [1] : vector<32x32xf32> to vector<32xf32>
    %6 = vector.shape_cast %5 : vector<32xf32> to vector<32x1xf32>
    %c0_5 = arith.constant 0 : index
    %c0_6 = arith.constant 0 : index
    %7 = vector.load %arg4[%c0_5, %c0_6] : memref<32x1xf32, #tpu.memory_space<vmem>>, vector<32x1xf32>
    tpu.vector_store %arg4[%c0_5, %c0_6], %6 {strides = array<i32>} : memref<32x1xf32, #tpu.memory_space<vmem>>, vector<32x1xf32>,
    %8 = math.absf %3 : vector<32x32xf32>
    %9 = vector.shape_cast %8 : vector<32x32xf32> to vector<1x32x32xf32>
    %cst_7 = arith.constant dense<0.000000e+00> : vector<1xf32>
    %10 = vector.multi_reduction <add>, %9, %cst_7 [1, 2] : vector<1x32x32xf32> to vector<1xf32>
    %11 = vector.shape_cast %10 : vector<1xf32> to vector<1x1x1xf32>
    %12 = vector.extract %11[0, 0, 0] : f32 from vector<1x1x1xf32>
    %13 = vector.broadcast %12 : f32 to vector<1x1xf32>
    %14 = vector.shape_cast %13 : vector<1x1xf32> to vector<1x1x1xf32>
    %c0_8 = arith.constant 0 : index
    %c0_9 = arith.constant 0 : index
    %c0_10 = arith.constant 0 : index
    %15 = vector.load %arg5[%c0_8, %c0_9, %c0_10] : memref<1x1x1xf32, #tpu.memory_space<vmem>>, vector<1x1x1xf32>
    tpu.vector_store %arg5[%c0_8, %c0_9, %c0_10], %14 {strides = array<i32>} : memref<1x1x1xf32, #tpu.memory_space<vmem>>, vector<1x1x1xf32>,
    return
  }
  func.func @transform_0(%arg0: i32) -> (i32, i32) {
    %c0_i32 = arith.constant 0 : i32
    %c0_i32_0 = arith.constant 0 : i32
    return %arg0, %c0_i32 : i32, i32
  }
  func.func @transform_1(%arg0: i32) -> (i32, i32) {
    %c0_i32 = arith.constant 0 : i32
    %c0_i32_0 = arith.constant 0 : i32
    return %arg0, %c0_i32 : i32, i32
  }
  func.func @transform_2(%arg0: i32) -> (i32, i32) {
    %c0_i32 = arith.constant 0 : i32
    %c0_i32_0 = arith.constant 0 : i32
    return %arg0, %c0_i32 : i32, i32
  }
  func.func @transform_3(%arg0: i32) -> (i32, i32) {
    %c0_i32 = arith.constant 0 : i32
    %c0_i32_0 = arith.constant 0 : i32
    return %arg0, %c0_i32 : i32, i32
  }
  func.func @transform_4(%arg0: i32) -> (i32, i32, i32) {
    %c0_i32 = arith.constant 0 : i32
    %c0_i32_0 = arith.constant 0 : i32
    %c0_i32_1 = arith.constant 0 : i32
    return %arg0, %c0_i32, %c0_i32_0 : i32, i32, i32
  }
}

</mosaic_0001>

<llo_original>
// kernel: cost_loss.1
$region0: #{cost_loss.1}
  #allocation0 [shape = 'u32[]', space=smem, size = 0x4, offset = 0x4, fixed_abs, tag = 'smem constant byte address 0x4 - core index']
  #allocation1 [shape = 'u32[144,128]{1,0:T(1,128)}', space=vmem, size = 0x12000, scoped, tag = 'internal scratch']
  %s0 = inlined_call_operand.hbm [shape: f32[32,32], index: 0, kind: input, shape index: {}]
  %s1 = inlined_call_operand.hbm [shape: f32[32,32], index: 1, kind: input, shape index: {}]
  %s2 = inlined_call_operand.hbm [shape: f32[32,32], index: 2, kind: input, shape index: {}]
  %s3 = inlined_call_operand.vmem [shape: f32[32,1], index: 3, kind: output, shape index: {0}]
  %s4 = inlined_call_operand.hbm [shape: f32[1,1,1], index: 4, kind: output, shape index: {1}]
  %5 = xla_tuple %s3, %s4
  %s6 = sld [smem:[#allocation0]]
  $region42: #{cost_loss.1} parent=0
    _
  %s8 = ssub.s32 1, %s6
  %s9 = scalar_select 0, %s8, %s6
  $region1: #{cost_loss.1} parent=0
    #allocation2 [shape = 'u8[16384]{0}', space=vmem, size = 0x4000, scoped, tag = 'input window, operand 0, single buffered']
    #allocation3 [shape = 's32[1]{0}', space=sflag, size = 0x4, scoped, tag = 'scoped memory for cost_loss.1']
    #allocation4 [shape = 's32[1]{0}', space=sflag, size = 0x4, scoped, tag = 'scoped memory for cost_loss.1']
    #allocation5 [shape = 'u8[16384]{0}', space=vmem, size = 0x4000, scoped, tag = 'input window, operand 1, single buffered']
    #allocation6 [shape = 's32[1]{0}', space=sflag, size = 0x4, scoped, tag = 'scoped memory for cost_loss.1']
    #allocation7 [shape = 'u8[16384]{0}', space=vmem, size = 0x4000, scoped, tag = 'input window, operand 2, single buffered']
    #allocation8 [shape = 'u8[512]{0}', space=vmem, size = 0x400, scoped, tag = 'output window, operand 1, single buffered']
    %10 = vsyncpa [#allocation3], 0
    %11 = vsyncpa [#allocation6], 0
    %12 = vsyncpa [#allocation4], 0
    // Predicated region
    $region2: #{cost_loss.1} parent=1 // pred_check
      _
    $region3: #{cost_loss.1} parent=1 // pred_check_branch
      %14 = sbr.rel (0) target = $region5
    $region4: #{cost_loss.1} parent=1 // pred_region
      %s16 = ssub.s32 512, 512
      %17 = vsyncadd [#allocation3], %s16
      %s18 = sshll.u32 [#allocation2], 4
      %s19 = int_to_ptr.vmem [resolvable:$true] %s18
      %24 = dma.hbm_to_vmem [thread:$0]  %s0, 512, %s19, [#allocation3], 128, 128, 8
    $region5: #{cost_loss.1} parent=1 // pred_fallthru
      _
    // Predicated region
    $region6: #{cost_loss.1} parent=1 // pred_check
      _
    $region7: #{cost_loss.1} parent=1 // pred_check_branch
      %26 = sbr.rel (0) target = $region9
    $region8: #{cost_loss.1} parent=1 // pred_region
      %s28 = ssub.s32 512, 512
      %29 = vsyncadd [#allocation6], %s28
      %s30 = sshll.u32 [#allocation5], 4
      %s31 = int_to_ptr.vmem [resolvable:$true] %s30
      %36 = dma.hbm_to_vmem [thread:$0]  %s1, 512, %s31, [#allocation6], 128, 128, 8
    $region9: #{cost_loss.1} parent=1 // pred_fallthru
      _
    // Predicated region
    $region10: #{cost_loss.1} parent=1 // pred_check
      _
    $region11: #{cost_loss.1} parent=1 // pred_check_branch
      %38 = sbr.rel (0) target = $region13
    $region12: #{cost_loss.1} parent=1 // pred_region
      %s40 = ssub.s32 512, 512
      %41 = vsyncadd [#allocation6], %s40
      %s42 = sshll.u32 [#allocation7], 4
      %s43 = int_to_ptr.vmem [resolvable:$true] %s42
      %48 = dma.hbm_to_vmem [thread:$0]  %s2, 512, %s43, [#allocation6], 128, 128, 8
    $region13: #{cost_loss.1} parent=1 // pred_fallthru
      _
    // Predicated region
    $region14: #{cost_loss.1} parent=1 // pred_check
      _
    $region15: #{cost_loss.1} parent=1 // pred_check_branch
      %50 = sbr.rel (0) target = $region17
    $region16: #{cost_loss.1} parent=1 // pred_region
      %51 = dma.done [#allocation3], 512
    $region17: #{cost_loss.1} parent=1 // pred_fallthru
      _
    // Predicated region
    $region18: #{cost_loss.1} parent=1 // pred_check
      _
    $region19: #{cost_loss.1} parent=1 // pred_check_branch
      %53 = sbr.rel (0) target = $region21
    $region20: #{cost_loss.1} parent=1 // pred_region
      %54 = dma.done [#allocation6], 512
    $region21: #{cost_loss.1} parent=1 // pred_fallthru
      _
    // Predicated region
    $region22: #{cost_loss.1} parent=1 // pred_check
      _
    $region23: #{cost_loss.1} parent=1 // pred_check_branch
      %56 = sbr.rel (0) target = $region25
    $region24: #{cost_loss.1} parent=1 // pred_region
      %57 = dma.done [#allocation6], 512
    $region25: #{cost_loss.1} parent=1 // pred_fallthru
      _
    %v58 = vld [vmem:[#allocation2] sm:$0xff]
    %v59 = vld [vmem:[#allocation2 + $0x8] sm:$0xff]
    %v60 = vld [vmem:[#allocation2 + $0x10] sm:$0xff]
    %v61 = vld [vmem:[#allocation2 + $0x18] sm:$0xff]
    %v62 = vld [vmem:[#allocation5] sm:$0xff]
    %v63 = vld [vmem:[#allocation5 + $0x8] sm:$0xff]
    %v64 = vld [vmem:[#allocation5 + $0x10] sm:$0xff]
    %v65 = vld [vmem:[#allocation5 + $0x18] sm:$0xff]
    %v66 = vld [vmem:[#allocation7] sm:$0xff]
    %v67 = vld [vmem:[#allocation7 + $0x8] sm:$0xff]
    %v68 = vld [vmem:[#allocation7 + $0x10] sm:$0xff]
    %v69 = vld [vmem:[#allocation7 + $0x18] sm:$0xff]
    %v70 = vsub.f32 %v58, %v62
    %v71 = vsub.f32 %v59, %v63
    %v72 = vsub.f32 %v60, %v64
    %v73 = vsub.f32 %v61, %v65
    %v74 = vmul.f32 %v66, %v70
    %v75 = vmul.f32 %v67, %v71
    %v76 = vmul.f32 %v68, %v72
    %v77 = vmul.f32 %v69, %v73
    %vm78 = vcmask 261120
    %v79 = vsel %vm78, %v74, 0.0
    %80 = vadd.xlane.f32.xlu0 %v79
    %v81 = vpop.xlane.xlu0 %80
    %v82 = vsel %vm78, %v75, 0.0
    %83 = vadd.xlane.f32.xlu0 %v82
    %v84 = vpop.xlane.xlu0 %83
    %v85 = vsel %vm78, %v76, 0.0
    %86 = vadd.xlane.f32.xlu0 %v85
    %v87 = vpop.xlane.xlu0 %86
    %v88 = vsel %vm78, %v77, 0.0
    %89 = vadd.xlane.f32.xlu0 %v88
    %v90 = vpop.xlane.xlu0 %89
    %vm91 = vcmask 7168
    %92 = vst.msk [vmem:[%s3] sm:$0xff] %vm91, %v81
    %93 = vst.msk [vmem:[%s3 + $0x8] sm:$0xff] %vm91, %v84
    %94 = vst.msk [vmem:[%s3 + $0x10] sm:$0xff] %vm91, %v87
    %95 = vst.msk [vmem:[%s3 + $0x18] sm:$0xff] %vm91, %v90
    %v96 = vand.u32 2147483647, %v70
    %v97 = vand.u32 2147483647, %v71
    %v98 = vand.u32 2147483647, %v72
    %v99 = vand.u32 2147483647, %v73
    %v100 = vsel %vm78, %v96, 0.0
    %v101 = vsel %vm78, %v97, 0.0
    %v102 = vadd.f32 %v100, %v101
    %v103 = vsel %vm78, %v98, 0.0
    %v104 = vadd.f32 %v102, %v103
    %v105 = vsel %vm78, %v99, 0.0
    %v106 = vadd.f32 %v104, %v105
    %107 = vadd.xlane.f32.xlu0 %v106
    %v108 = vpop.xlane.xlu0 %107
    %v109 = vrot.slane %v108, 4
    %v110 = vadd.f32 %v108, %v109
    %v111 = vrot.slane %v110, 2
    %v112 = vadd.f32 %v110, %v111
    %v113 = vrot.slane %v112, 1
    %v114 = vadd.f32 %v112, %v113
    %s115 = vtos %v114
    %v116 = vstv %s115
    %vm117 = vcmask 0
    %118 = vst.msk [vmem:[#allocation8] sm:$0x1] %vm117, %v116
    // Predicated region
    $region26: #{cost_loss.1} parent=1 // pred_check
      _
    $region27: #{cost_loss.1} parent=1 // pred_check_branch
      %120 = sbr.rel (0) target = $region29
    $region28: #{cost_loss.1} parent=1 // pred_region
      _
    $region29: #{cost_loss.1} parent=1 // pred_fallthru
      _
    // Predicated region
    $region30: #{cost_loss.1} parent=1 // pred_check
      _
    $region31: #{cost_loss.1} parent=1 // pred_check_branch
      %122 = sbr.rel (0) target = $region33
    $region32: #{cost_loss.1} parent=1 // pred_region
      %s124 = ssub.s32 16, 16
      %125 = vsyncadd [#allocation4], %s124
      %s127 = sshll.u32 [#allocation8], 4
      %s128 = int_to_ptr.vmem [resolvable:$true] %s127
      %130 = dma.vmem_to_hbm [thread:$0]  %s128, 16, %s4, [#allocation4]
    $region33: #{cost_loss.1} parent=1 // pred_fallthru
      _
    // Predicated region
    $region34: #{cost_loss.1} parent=1 // pred_check
      _
    $region35: #{cost_loss.1} parent=1 // pred_check_branch
      %132 = sbr.rel (0) target = $region37
    $region36: #{cost_loss.1} parent=1 // pred_region
      _
    $region37: #{cost_loss.1} parent=1 // pred_fallthru
      _
    // Predicated region
    $region38: #{cost_loss.1} parent=1 // pred_check
      _
    $region39: #{cost_loss.1} parent=1 // pred_check_branch
      %134 = sbr.rel (0) target = $region41
    $region40: #{cost_loss.1} parent=1 // pred_region
      %135 = dma.done [#allocation4], 16
    $region41: #{cost_loss.1} parent=1 // pred_fallthru
      _
    %136 = vsyncpa [#allocation3], 1
    %137 = vsyncpa [#allocation6], 1
    %138 = vsyncpa [#allocation4], 1

</llo_original>
